<compile_context>
chip_gen: v7x
topology: tpu7x:2x2x1
jax: 0.10.0
libtpu: 0.0.40
codegen_flags: <defaults>
</compile_context>

<pallas_src>
import functools

import jax
import jax.numpy as jnp
from jax.experimental import pallas as pl
from jax.experimental.pallas import tpu as pltpu

_LANE = 128
_FUSED_VMEM_BUDGET = 40 * 1024 * 1024   # in+out blocks, f32, double-buffered
_MAX_FUSED_LANE_BLOCKS = 256            # caps unrolled statement count in fused kernel
_SPLIT_TILE_BUDGET = 8 * 1024 * 1024    # per HW tile (in+out, double-buffered) in split path


def _channel_conv_scale(pooled, w_ref, pad_ref):
    """scale = 1 + sigmoid(conv1d_k(pooled)) along the channel (sublane) axis.

    pooled : (C, 1) float32 value (per-channel global mean)
    w_ref  : (k,)  SMEM ref holding the Conv1d taps (cross-correlation, as in PyTorch)
    pad_ref: (C + 2*pad, 1) float32 VMEM scratch used to realize the zero-padded
             channel shifts with plain offset loads -> k VPU FMAs, no MXU.
    """
    k = w_ref.shape[0]
    pad = (k - 1) // 2
    C = pooled.shape[0]
    pad_ref[...] = jnp.zeros_like(pad_ref)
    pad_ref[pad:pad + C, :] = pooled
    conv = w_ref[0] * pad_ref[0:C, :]
    for j in range(1, k):
        conv = conv + w_ref[j] * pad_ref[j:j + C, :]
    return 1.0 + jax.nn.sigmoid(conv)


def _fca_fused_kernel(x_ref, w_ref, o_ref, pad_ref, *, true_hw):
    # x_ref/o_ref: (1, C, HWp) VMEM blocks (one batch element); w_ref: (k,) SMEM.
    hwp = x_ref.shape[2]
    nblk = hwp // _LANE
    # global average pool: VPU adds over 128-lane column blocks, one cross-lane reduce
    part = x_ref[0, :, 0:_LANE]
    for i in range(1, nblk):
        part = part + x_ref[0, :, i * _LANE:(i + 1) * _LANE]
    pooled = jnp.sum(part, axis=1, keepdims=True) * (1.0 / true_hw)      # (C, 1)
    scale = _channel_conv_scale(pooled, w_ref, pad_ref)                  # (C, 1)
    # out = x * (1 + sigmoid(conv)) == x*y + x ; one VPU multiply per element
    for i in range(nblk):
        sl = slice(i * _LANE, (i + 1) * _LANE)
        o_ref[0, :, sl] = x_ref[0, :, sl] * scale


def _fca_pool_kernel(x_ref, w_ref, scale_ref, acc_ref, pad_ref, *, true_hw):
    # grid = (B, HWp // T); HW-tile reduction axis is last ("arbitrary").
    t = pl.program_id(1)

    @pl.when(t == 0)
    def _():
        acc_ref[...] = jnp.zeros_like(acc_ref)

    tile = x_ref.shape[2]
    part = x_ref[0, :, 0:_LANE]
    for i in range(1, tile // _LANE):
        part = part + x_ref[0, :, i * _LANE:(i + 1) * _LANE]
    acc_ref[...] += part                                                  # (C, 128) partials

    @pl.when(t == pl.num_programs(1) - 1)
    def _():
        pooled = jnp.sum(acc_ref[...], axis=1, keepdims=True) * (1.0 / true_hw)
        scale_ref[0] = _channel_conv_scale(pooled, w_ref, pad_ref)        # (C, 1)


def _fca_apply_kernel(x_ref, s_ref, o_ref):
    # (1, C, T) * (1, C, 1) -> lane-dense elementwise scale
    o_ref[0] = x_ref[0] * s_ref[0]


def _pick_hw_tile(hwp, c):
    for t in (4096, 2048, 1024, 512, 256, 128):
        if hwp % t == 0 and 16 * c * t <= _SPLIT_TILE_BUDGET:
            return t
    return _LANE


def fca_forward(x, conv_w, *, force_split=False):
    """FCA forward.  x: (B, C, H, W) float32 (NCHW).  conv_w: (k,) Conv1d taps, k odd."""
    B, C, H, W = x.shape
    k = int(conv_w.shape[0])
    assert k % 2 == 1, "FCA uses an odd Conv1d kernel size"
    pad = (k - 1) // 2
    hw = H * W
    hwp = ((hw + _LANE - 1) // _LANE) * _LANE            # lane-dense spatial axis

    x_flat = x.reshape(B, C, hw).astype(jnp.float32)
    if hwp != hw:
        # zero padding; excluded from the mean (divide by the true HW inside the kernel)
        x_flat = jnp.pad(x_flat, ((0, 0), (0, 0), (0, hwp - hw)))
    w = conv_w.astype(jnp.float32)

    fused_bytes = 16 * C * hwp                           # in+out, f32, double-buffered
    use_fused = (not force_split
                 and fused_bytes <= _FUSED_VMEM_BUDGET
                 and hwp // _LANE <= _MAX_FUSED_LANE_BLOCKS)

    if use_fused:
        out_flat = pl.pallas_call(
            functools.partial(_fca_fused_kernel, true_hw=float(hw)),
            out_shape=jax.ShapeDtypeStruct((B, C, hwp), jnp.float32),
            grid_spec=pltpu.PrefetchScalarGridSpec(
                num_scalar_prefetch=0,
                grid=(B,),
                in_specs=[
                    pl.BlockSpec((1, C, hwp), lambda b: (b, 0, 0)),
                    pl.BlockSpec(memory_space=pltpu.MemorySpace.SMEM),
                ],
                out_specs=pl.BlockSpec((1, C, hwp), lambda b: (b, 0, 0)),
                scratch_shapes=[pltpu.VMEM((C + 2 * pad, 1), jnp.float32)],
            ),
            compiler_params=pltpu.CompilerParams(
                dimension_semantics=("parallel",),
                vmem_limit_bytes=max(32 * 1024 * 1024, fused_bytes + (4 << 20)),
            ),
        )(x_flat, w)
    else:
        t = _pick_hw_tile(hwp, C)
        nt = hwp // t
        vmem_limit = max(32 * 1024 * 1024, 16 * C * t + (4 << 20))
        # pass 1: pooled mean + channel conv + sigmoid -> scale = (B, C, 1)
        scale = pl.pallas_call(
            functools.partial(_fca_pool_kernel, true_hw=float(hw)),
            out_shape=jax.ShapeDtypeStruct((B, C, 1), jnp.float32),
            grid_spec=pltpu.PrefetchScalarGridSpec(
                num_scalar_prefetch=0,
                grid=(B, nt),
                in_specs=[
                    pl.BlockSpec((1, C, t), lambda b, i: (b, 0, i)),
                    pl.BlockSpec(memory_space=pltpu.MemorySpace.SMEM),
                ],
                out_specs=pl.BlockSpec((1, C, 1), lambda b, i: (b, 0, 0)),
                scratch_shapes=[pltpu.VMEM((C, _LANE), jnp.float32),
                                pltpu.VMEM((C + 2 * pad, 1), jnp.float32)],
            ),
            compiler_params=pltpu.CompilerParams(
                dimension_semantics=("parallel", "arbitrary"),
                vmem_limit_bytes=vmem_limit,
            ),
        )(x_flat, w)
        # pass 2: out = x * scale, lane-dense tiles over HW
        out_flat = pl.pallas_call(
            _fca_apply_kernel,
            out_shape=jax.ShapeDtypeStruct((B, C, hwp), jnp.float32),
            grid_spec=pltpu.PrefetchScalarGridSpec(
                num_scalar_prefetch=0,
                grid=(B, nt),
                in_specs=[
                    pl.BlockSpec((1, C, t), lambda b, i: (b, 0, i)),
                    pl.BlockSpec((1, C, 1), lambda b, i: (b, 0, 0)),
                ],
                out_specs=pl.BlockSpec((1, C, t), lambda b, i: (b, 0, i)),
            ),
            compiler_params=pltpu.CompilerParams(
                dimension_semantics=("parallel", "parallel"),
                vmem_limit_bytes=vmem_limit,
            ),
        )(x_flat, scale)

    if hwp != hw:
        out_flat = out_flat[:, :, :hw]
    return out_flat.reshape(B, C, H, W)


def fca_reference(x, conv_w):
    """Plain-JAX reference matching the PyTorch module exactly."""
    B, C, H, W = x.shape
    k = conv_w.shape[0]
    pad = (k - 1) // 2
    pooled = x.astype(jnp.float32).mean(axis=(2, 3))                 # (B, C)
    pooled_pad = jnp.pad(pooled, ((0, 0), (pad, pad)))               # Conv1d zero padding
    conv = sum(conv_w[j] * pooled_pad[:, j:j + C] for j in range(k))
    s = jax.nn.sigmoid(conv)[:, :, None, None]                       # (B, C, 1, 1)
    return x * s + x


if __name__ == "__main__":
    key = jax.random.PRNGKey(0)
    kx, kw = jax.random.split(key)

    B, C, H, W = 2, 4, 16, 16
    k_size = 3

    x = jax.random.normal(kx, (B, C, H, W), dtype=jnp.float32)
    # deterministic stand-in for PyTorch's Conv1d(1,1,k,bias=False) weight (shape (1,1,k))
    conv_w = (jax.random.uniform(kw, (k_size,), dtype=jnp.float32) - 0.5)

    ref = fca_reference(x, conv_w)

    out_fused = jax.block_until_ready(fca_forward(x, conv_w))
    assert out_fused.shape == (B, C, H, W)
    assert jnp.allclose(out_fused, ref, atol=1e-5, rtol=1e-5), "fused path mismatch"

    # also exercise the HW-tiled pool+apply path used for large C*H*W (v7x-sized inputs)
    out_split = jax.block_until_ready(fca_forward(x, conv_w, force_split=True))
    assert out_split.shape == (B, C, H, W)
    assert jnp.allclose(out_split, ref, atol=1e-5, rtol=1e-5), "split path mismatch"

    print("KERNEL_OK")
</pallas_src>

<mosaic_0001>
module attributes {stable_mosaic.version = 11 : i64} {
  func.func @_fca_fused_kernel(%arg0: i32, %arg1: memref<1x4x256xf32, #tpu.memory_space<vmem>>, %arg2: memref<3xf32, #tpu.memory_space<smem>>, %arg3: memref<1x4x256xf32, #tpu.memory_space<vmem>>, %arg4: memref<6x1xf32, #tpu.memory_space<vmem>>) attributes {dimension_semantics = [#tpu.dimension_semantics<parallel>], iteration_bounds = array<i64: 2>, scalar_prefetch = 0 : i64, scratch_operands = 1 : i64, tpu.core_type = #tpu.core_type<tc>, window_params = [{transform_indices = @transform_0, window_bounds = array<i64: 1, 4, 256>}, {transform_indices = @transform_1, window_bounds = array<i64: 3>}, {transform_indices = @transform_2, window_bounds = array<i64: 1, 4, 256>}]} {
    %c0 = arith.constant 0 : index
    %c0_0 = arith.constant 0 : index
    %c0_1 = arith.constant 0 : index
    %0 = vector.load %arg1[%c0, %c0_0, %c0_1] : memref<1x4x256xf32, #tpu.memory_space<vmem>>, vector<1x4x128xf32>
    %1 = vector.shape_cast %0 : vector<1x4x128xf32> to vector<4x128xf32>
    %c0_2 = arith.constant 0 : index
    %c0_3 = arith.constant 0 : index
    %c128 = arith.constant 128 : index
    %2 = vector.load %arg1[%c0_2, %c0_3, %c128] : memref<1x4x256xf32, #tpu.memory_space<vmem>>, vector<1x4x128xf32>
    %3 = vector.shape_cast %2 : vector<1x4x128xf32> to vector<4x128xf32>
    %4 = arith.addf %1, %3 : vector<4x128xf32>
    %cst = arith.constant dense<0.000000e+00> : vector<4xf32>
    %5 = vector.multi_reduction <add>, %4, %cst [1] : vector<4x128xf32> to vector<4xf32>
    %6 = vector.shape_cast %5 : vector<4xf32> to vector<4x1xf32>
    %cst_4 = arith.constant 3.906250e-03 : f32
    %7 = vector.broadcast %cst_4 : f32 to vector<4x1xf32>
    %8 = arith.mulf %6, %7 : vector<4x1xf32>
    %cst_5 = arith.constant 0.000000e+00 : f32
    %9 = vector.broadcast %cst_5 : f32 to vector<6x1xf32>
    %c0_6 = arith.constant 0 : index
    %c0_7 = arith.constant 0 : index
    %10 = vector.load %arg4[%c0_6, %c0_7] : memref<6x1xf32, #tpu.memory_space<vmem>>, vector<6x1xf32>
    tpu.vector_store %arg4[%c0_6, %c0_7], %9 {strides = array<i32>} : memref<6x1xf32, #tpu.memory_space<vmem>>, vector<6x1xf32>,
    %c1 = arith.constant 1 : index
    %c0_8 = arith.constant 0 : index
    %11 = vector.load %arg4[%c1, %c0_8] : memref<6x1xf32, #tpu.memory_space<vmem>>, vector<4x1xf32>
    tpu.vector_store %arg4[%c1, %c0_8], %8 {strides = array<i32>} : memref<6x1xf32, #tpu.memory_space<vmem>>, vector<4x1xf32>,
    %c0_9 = arith.constant 0 : index
    %12 = memref.load %arg2[%c0_9] : memref<3xf32, #tpu.memory_space<smem>>
    %c0_10 = arith.constant 0 : index
    %c0_11 = arith.constant 0 : index
    %13 = vector.load %arg4[%c0_10, %c0_11] : memref<6x1xf32, #tpu.memory_space<vmem>>, vector<4x1xf32>
    %14 = vector.broadcast %12 : f32 to vector<4x1xf32>
    %15 = arith.mulf %14, %13 : vector<4x1xf32>
    %c1_12 = arith.constant 1 : index
    %16 = memref.load %arg2[%c1_12] : memref<3xf32, #tpu.memory_space<smem>>
    %c1_13 = arith.constant 1 : index
    %c0_14 = arith.constant 0 : index
    %17 = vector.load %arg4[%c1_13, %c0_14] : memref<6x1xf32, #tpu.memory_space<vmem>>, vector<4x1xf32>
    %18 = vector.broadcast %16 : f32 to vector<4x1xf32>
    %19 = arith.mulf %18, %17 : vector<4x1xf32>
    %20 = arith.addf %15, %19 : vector<4x1xf32>
    %c2 = arith.constant 2 : index
    %21 = memref.load %arg2[%c2] : memref<3xf32, #tpu.memory_space<smem>>
    %c2_15 = arith.constant 2 : index
    %c0_16 = arith.constant 0 : index
    %22 = vector.load %arg4[%c2_15, %c0_16] : memref<6x1xf32, #tpu.memory_space<vmem>>, vector<4x1xf32>
    %23 = vector.broadcast %21 : f32 to vector<4x1xf32>
    %24 = arith.mulf %23, %22 : vector<4x1xf32>
    %25 = arith.addf %20, %24 : vector<4x1xf32>
    %26 = arith.negf %25 : vector<4x1xf32>
    %27 = math.exp %26 : vector<4x1xf32>
    %cst_17 = arith.constant 1.000000e+00 : f32
    %28 = vector.broadcast %cst_17 : f32 to vector<4x1xf32>
    %29 = arith.addf %28, %27 : vector<4x1xf32>
    %30 = arith.divf %28, %29 : vector<4x1xf32>
    %cst_18 = arith.constant 1.000000e+00 : f32
    %31 = vector.broadcast %cst_18 : f32 to vector<4x1xf32>
    %32 = arith.addf %31, %30 : vector<4x1xf32>
    %c0_19 = arith.constant 0 : index
    %c0_20 = arith.constant 0 : index
    %c0_21 = arith.constant 0 : index
    %33 = vector.load %arg1[%c0_19, %c0_20, %c0_21] : memref<1x4x256xf32, #tpu.memory_space<vmem>>, vector<1x4x128xf32>
    %34 = vector.shape_cast %33 : vector<1x4x128xf32> to vector<4x128xf32>
    %35 = vector.broadcast %32 : vector<4x1xf32> to vector<4x128xf32>
    %36 = arith.mulf %34, %35 : vector<4x128xf32>
    %c0_22 = arith.constant 0 : index
    %c0_23 = arith.constant 0 : index
    %c0_24 = arith.constant 0 : index
    %37 = vector.load %arg3[%c0_22, %c0_23, %c0_24] : memref<1x4x256xf32, #tpu.memory_space<vmem>>, vector<1x4x128xf32>
    %38 = vector.shape_cast %37 : vector<1x4x128xf32> to vector<4x128xf32>
    %39 = vector.shape_cast %36 : vector<4x128xf32> to vector<1x4x128xf32>
    tpu.vector_store %arg3[%c0_22, %c0_23, %c0_24], %39 {strides = array<i32>} : memref<1x4x256xf32, #tpu.memory_space<vmem>>, vector<1x4x128xf32>,
    %c0_25 = arith.constant 0 : index
    %c0_26 = arith.constant 0 : index
    %c128_27 = arith.constant 128 : index
    %40 = vector.load %arg1[%c0_25, %c0_26, %c128_27] : memref<1x4x256xf32, #tpu.memory_space<vmem>>, vector<1x4x128xf32>
    %41 = vector.shape_cast %40 : vector<1x4x128xf32> to vector<4x128xf32>
    %42 = vector.broadcast %32 : vector<4x1xf32> to vector<4x128xf32>
    %43 = arith.mulf %41, %42 : vector<4x128xf32>
    %c0_28 = arith.constant 0 : index
    %c0_29 = arith.constant 0 : index
    %c128_30 = arith.constant 128 : index
    %44 = vector.load %arg3[%c0_28, %c0_29, %c128_30] : memref<1x4x256xf32, #tpu.memory_space<vmem>>, vector<1x4x128xf32>
    %45 = vector.shape_cast %44 : vector<1x4x128xf32> to vector<4x128xf32>
    %46 = vector.shape_cast %43 : vector<4x128xf32> to vector<1x4x128xf32>
    tpu.vector_store %arg3[%c0_28, %c0_29, %c128_30], %46 {strides = array<i32>} : memref<1x4x256xf32, #tpu.memory_space<vmem>>, vector<1x4x128xf32>,
    return
  }
  func.func @transform_0(%arg0: i32) -> (i32, i32, i32) {
    %c0_i32 = arith.constant 0 : i32
    %c0_i32_0 = arith.constant 0 : i32
    %c0_i32_1 = arith.constant 0 : i32
    return %arg0, %c0_i32, %c0_i32_0 : i32, i32, i32
  }
  func.func @transform_1(%arg0: i32) -> i32 {
    %c0_i32 = arith.constant 0 : i32
    %c0_i32_0 = arith.constant 0 : i32
    return %c0_i32 : i32
  }
  func.func @transform_2(%arg0: i32) -> (i32, i32, i32) {
    %c0_i32 = arith.constant 0 : i32
    %c0_i32_0 = arith.constant 0 : i32
    %c0_i32_1 = arith.constant 0 : i32
    return %arg0, %c0_i32, %c0_i32_0 : i32, i32, i32
  }
}

</mosaic_0001>

<llo_original>
// kernel: tpu_custom_call.1
$region0: #{tpu_custom_call.1}
  #allocation0 [shape = 'u32[]', space=smem, size = 0x4, offset = 0x4, fixed_abs, tag = 'smem constant byte address 0x4 - core index']
  #allocation1 [shape = 'u32[144,128]{1,0:T(1,128)}', space=vmem, size = 0x12000, scoped, tag = 'internal scratch']
  #allocation2 [shape = 'f32[6,1]{1,0:T(8,128)}', space=vmem, size = 0x1000, scoped, tag = 'scratch operand']
  %s0 = inlined_call_operand.hbm [shape: f32[2,4,256], index: 0, kind: input, shape index: {}]
  %s1 = inlined_call_operand.vmem [shape: f32[3], index: 1, kind: input, shape index: {}]
  %s2 = inlined_call_operand.hbm [shape: f32[2,4,256], index: 2, kind: output, shape index: {}]
  %s3 = sld [smem:[#allocation0]]
  $region49: #{tpu_custom_call.1} parent=0
    _
  %s5 = ssub.s32 1, %s3
  %s6 = scalar_select 0, %s5, %s3
  $region1: #{tpu_custom_call.1} parent=0
    #allocation3 [shape = 'u8[8192]{0}', space=vmem, size = 0x2000, scoped, tag = 'input window, operand 0']
    #allocation4 [shape = 's32[2]{0}', space=sflag, size = 0x8, scoped, tag = 'scoped memory for tpu_custom_call.1']
    #allocation5 [shape = 's32[2]{0}', space=sflag, size = 0x8, scoped, tag = 'scoped memory for tpu_custom_call.1']
    #allocation6 [shape = 's32[2]{0}', space=sflag, size = 0x8, scoped, tag = 'scoped memory for tpu_custom_call.1']
    #allocation7 [shape = 'u8[512]{0}', space=smem, size = 0x200, scoped, tag = 'input window, operand 1, single buffered']
    #allocation8 [shape = 'u8[8192]{0}', space=vmem, size = 0x2000, scoped, tag = 'output window, operand 0']
    %7 = vsyncpa [#allocation4], 0
    %s8 = scalar_lea.sflag [#allocation4], 1
    %9 = vsyncpa %s8, 0
    %10 = vsyncpa [#allocation6], 0
    %11 = vsyncpa [#allocation5], 0
    %s12 = scalar_lea.sflag [#allocation5], 1
    %13 = vsyncpa %s12, 0
    loop: start=0, step=1, limit=4
    $region2: #{tpu_custom_call.1} parent=1 // loop_pre_header
      _
    $region3: #{tpu_custom_call.1} parent=1 // loop_header
      %s15 = sphi 0, %s19
      %p16 = scmp.ge.s32.totalorder %s15, 4
      %s25 = sphi 0, %s27
      %s28 = sphi 0, %s25
      %s29 = sphi 0, %s28
      %s45 = sphi 0, %s29
      %s49 = sphi 0, %s49
      %s51 = sphi 0, %s49
      %s52 = sphi 0, %s51
      %s66 = sphi 0, %s52
      %s72 = sphi 0, %s74
      %s75 = sphi 0, %s72
      %s76 = sphi 0, %s75
      %s92 = sphi 0, %s76
    $region4: #{tpu_custom_call.1} parent=1 // loop_header_branch
      %18 = sbr.rel (%p16) target = $region8
    $region5: #{tpu_custom_call.1} parent=1 // loop_body
      %s20 = ssub.s32 %s15, 1
      %s21 = ssub.s32 %s15, 2
      %s22 = sadd.s32 %s15, 1
      %s23 = ssub.s32 %s15, %s22
      %p24 = scmp.eq.s32.totalorder %s23, 0
      %s26 = sadd.s32 %s25, 1
      %s27 = scalar_select %p24, %s25, %s26
      %p30 = pneg %p24
      %p31 = scmp.eq.s32.totalorder %s15, 1
      %p32 = por %p30, %p31
      %p33 = scmp.ne.s32.totalorder %s25, %s28
      %p34 = scmp.eq.s32.totalorder %s15, 0
      %p35 = por %p33, %p34
      %p36 = scmp.ne.s32.totalorder %s25, %s28
      %p37 = scmp.eq.s32.totalorder %s20, 1
      %p38 = por %p36, %p37
      %p39 = scmp.ne.s32.totalorder %s28, %s29
      %p40 = scmp.eq.s32.totalorder %s20, 0
      %p41 = por %p39, %p40
      %p42 = scmp.ne.s32.totalorder %s28, %s29
      %p43 = scmp.eq.s32.totalorder %s21, 1
      %p44 = por %p42, %p43
      %p46 = scmp.ne.s32.totalorder %s29, %s45
      %p47 = scmp.eq.s32.totalorder %s21, 0
      %p48 = por %p46, %p47
      %s50 = sadd.s32 %s49, 1
      %p53 = scmp.eq.s32.totalorder %s15, 1
      %p54 = scmp.ne.s32.totalorder %s49, %s51
      %p55 = scmp.eq.s32.totalorder %s15, 0
      %p56 = por %p54, %p55
      %p57 = scmp.ne.s32.totalorder %s49, %s51
      %p58 = scmp.eq.s32.totalorder %s20, 1
      %p59 = por %p57, %p58
      %p60 = scmp.ne.s32.totalorder %s51, %s52
      %p61 = scmp.eq.s32.totalorder %s20, 0
      %p62 = por %p60, %p61
      %p63 = scmp.ne.s32.totalorder %s51, %s52
      %p64 = scmp.eq.s32.totalorder %s21, 1
      %p65 = por %p63, %p64
      %p67 = scmp.ne.s32.totalorder %s52, %s66
      %p68 = scmp.eq.s32.totalorder %s21, 0
      %p69 = por %p67, %p68
      %s70 = ssub.s32 %s15, %s22
      %p71 = scmp.eq.s32.totalorder %s70, 0
      %s73 = sadd.s32 %s72, 1
      %s74 = scalar_select %p71, %s72, %s73
      %p77 = pneg %p71
      %p78 = scmp.eq.s32.totalorder %s15, 1
      %p79 = por %p77, %p78
      %p80 = scmp.ne.s32.totalorder %s72, %s75
      %p81 = scmp.eq.s32.totalorder %s15, 0
      %p82 = por %p80, %p81
      %p83 = scmp.ne.s32.totalorder %s72, %s75
      %p84 = scmp.eq.s32.totalorder %s20, 1
      %p85 = por %p83, %p84
      %p86 = scmp.ne.s32.totalorder %s75, %s76
      %p87 = scmp.eq.s32.totalorder %s20, 0
      %p88 = por %p86, %p87
      %p89 = scmp.ne.s32.totalorder %s75, %s76
      %p90 = scmp.eq.s32.totalorder %s21, 1
      %p91 = por %p89, %p90
      %p93 = scmp.ne.s32.totalorder %s76, %s92
      %p94 = scmp.eq.s32.totalorder %s21, 0
      %p95 = por %p93, %p94
      %p96 = scmp.le.s32.totalorder 1, %s15
      %p97 = scmp.lt.s32.totalorder %s15, 3
      %p98 = pnand %p96, %p97
      %p99 = pneg %p98
      // Predicated region
      $region9: #{tpu_custom_call.1} parent=5 // pred_check
        _
      $region10: #{tpu_custom_call.1} parent=5 // pred_check_branch
        %101 = sbr.rel (%p98) target = $region12
      $region11: #{tpu_custom_call.1} parent=5 // pred_region
        %s102 = ssub.s32 %s15, 1
        // Predicated region
        $region13: #{tpu_custom_call.1} parent=11 // pred_check
          %p103 = pneg %p62
        $region14: #{tpu_custom_call.1} parent=11 // pred_check_branch
          %105 = sbr.rel (%p103) target = $region16
        $region15: #{tpu_custom_call.1} parent=11 // pred_region
          %s107 = ssub.s32 16, 16
          %108 = vsyncadd [#allocation6], %s107
          %s110 = sshll.u32 %s1, 4
          %s111 = int_to_ptr.vmem [resolvable:$true] %s110
          %113 = dma.vmem_to_smem %s111, 16, [#allocation7], [#allocation6]
        $region16: #{tpu_custom_call.1} parent=11 // pred_fallthru
          _
      $region12: #{tpu_custom_call.1} parent=5 // pred_fallthru
        _
      %p114 = scmp.lt.s32.totalorder %s15, 2
      // Predicated region
      $region17: #{tpu_custom_call.1} parent=5 // pred_check
        %p115 = pneg %p114
      $region18: #{tpu_custom_call.1} parent=5 // pred_check_branch
        %117 = sbr.rel (%p115) target = $region20
      $region19: #{tpu_custom_call.1} parent=5 // pred_region
        // Predicated region
        $region21: #{tpu_custom_call.1} parent=19 // pred_check
          %p118 = pneg %p35
        $region22: #{tpu_custom_call.1} parent=19 // pred_check_branch
          %120 = sbr.rel (%p118) target = $region24
        $region23: #{tpu_custom_call.1} parent=19 // pred_region
          %s121 = sand.u32 %s25, 1
          %s122 = scalar_lea.sflag [#allocation4], %s121
          %s123 = sand.u32 %s25, 1
          %s124 = smul.addr %s123, 8
          %s125 = scalar_lea.vmem [#allocation3], %s124
          %s127 = ssub.s32 128, 128
          %128 = vsyncadd %s122, %s127
          %s129 = smul.addr %s15, 2
          %s130 = smul.addr %s129, 64
          %s131 = scalar_lea.hbm %s0, %s130
          %s133 = sshll.u32 %s125, 4
          %s134 = int_to_ptr.vmem [resolvable:$true] %s133
          %136 = dma.hbm_to_vmem [thread:$0]  %s131, 128, %s134, %s122
        $region24: #{tpu_custom_call.1} parent=19 // pred_fallthru
          _
      $region20: #{tpu_custom_call.1} parent=5 // pred_fallthru
        _
      %p137 = scmp.le.s32.totalorder 1, %s15
      %p138 = scmp.lt.s32.totalorder %s15, 3
      %p139 = pnand %p137, %p138
      %p140 = pneg %p139
      // Predicated region
      $region25: #{tpu_custom_call.1} parent=5 // pred_check
        _
      $region26: #{tpu_custom_call.1} parent=5 // pred_check_branch
        %142 = sbr.rel (%p139) target = $region28
      $region27: #{tpu_custom_call.1} parent=5 // pred_region
        %s143 = ssub.s32 %s15, 1
        %s144 = sand.u32 %s28, 1
        %s145 = scalar_lea.sflag [#allocation4], %s144
        %s146 = sand.u32 %s28, 1
        %s147 = smul.addr %s146, 8
        %s148 = scalar_lea.vmem [#allocation3], %s147
        // Predicated region
        $region29: #{tpu_custom_call.1} parent=27 // pred_check
          %p149 = pneg %p41
        $region30: #{tpu_custom_call.1} parent=27 // pred_check_branch
          %151 = sbr.rel (%p149) target = $region32
        $region31: #{tpu_custom_call.1} parent=27 // pred_region
          %152 = dma.done %s145, 128
        $region32: #{tpu_custom_call.1} parent=27 // pred_fallthru
          _
        // Predicated region
        $region33: #{tpu_custom_call.1} parent=27 // pred_check
          %p153 = pneg %p62
        $region34: #{tpu_custom_call.1} parent=27 // pred_check_branch
          %155 = sbr.rel (%p153) target = $region36
        $region35: #{tpu_custom_call.1} parent=27 // pred_region
          %156 = dma.done [#allocation6], 16
        $region36: #{tpu_custom_call.1} parent=27 // pred_fallthru
          _
        %157 = sfence
        %s158 = sand.u32 %s28, 1
        %s159 = scalar_lea.sflag [#allocation4], %s158
        %s160 = sand.u32 %s28, 1
        %s161 = smul.addr %s160, 8
        %s162 = scalar_lea.vmem [#allocation3], %s161
        %p163 = pneg %p41
        %p164 = pneg %p38
        %p165 = pneg %p62
        %p166 = pneg %p59
        %p167 = pneg %p88
        %p168 = pneg %p85
        %s169 = sand.u32 %s75, 1
        %s170 = scalar_lea.sflag [#allocation5], %s169
        %s171 = sand.u32 %s75, 1
        %s172 = smul.addr %s171, 8
        %s173 = scalar_lea.vmem [#allocation8], %s172
        %v174 = vld [vmem:[%s148] sm:$0xf]
        %v175 = vld [vmem:[%s148 + $0x4] sm:$0xf]
        %v176 = vadd.f32 %v174, %v175
        %vm177 = vcmask 1043456
        %v178 = vsel %vm177, %v176, 0.0
        %179 = vadd.xlane.f32.xlu0 %v178
        %v180 = vpop.xlane.xlu0 %179
        %v181 = vmul.f32 %v180, 0.00390625
        %vm182 = vcmask 5120
        %183 = vst.msk [vmem:[#allocation2] sm:$0x3f] %vm182, 0.0
        %vm184 = vcmask 3072
        %185 = vst.msk [vmem:[#allocation2 + $0x1] sm:$0xf] %vm184, %v181
        %s186 = sld [smem:[#allocation7]]
        %v187 = vld [vmem:[#allocation2] sm:$0xf]
        %v188 = vstv %s186
        %v189 = vmul.f32 %v188, %v187
        %s190 = sld [smem:[#allocation7 + $0x1]]
        %v191 = vld [vmem:[#allocation2 + $0x1] sm:$0xf]
        %v192 = vstv %s190
        %v193 = vmul.f32 %v192, %v191
        %v194 = vadd.f32 %v189, %v193
        %s195 = sld [smem:[#allocation7 + $0x2]]
        %v196 = vld [vmem:[#allocation2 + $0x2] sm:$0xf]
        %v197 = vstv %s195
        %v198 = vmul.f32 %v197, %v196
        %v199 = vadd.f32 %v194, %v198
        %v200 = vxor.u32 %v199, 2147483648
        %v201 = vmul.f32 %v200, 1.442695
        %v202 = vpow.pop %v201
        %v203 = vadd.f32 %v202, 1.0
        %v204 = vrcp.pop %v203
        %v205 = vmul.f32 1.0, %v204
        %v206 = vadd.f32 %v205, 1.0
        %v207 = vld [vmem:[%s148] sm:$0xf]
        %209 = vset.pattern.permute.xlu0 0
        %210 = vperm.xlu0 %209, %v206
        %v211 = vpop.permute.xlu0 %210
        %v213 = vmul.f32 %v207, %v211
        %214 = vst [vmem:[%s173] sm:$0xf] %v213
        %v215 = vld [vmem:[%s148 + $0x4] sm:$0xf]
        %v216 = vmul.f32 %v215, %v211
        %217 = vst [vmem:[%s173 + $0x4] sm:$0xf] %v216
        %s218 = sand.u32 %s75, 1
        %s219 = scalar_lea.sflag [#allocation5], %s218
        %s220 = sand.u32 %s75, 1
        %s221 = smul.addr %s220, 8
        %s222 = scalar_lea.vmem [#allocation8], %s221
        // Predicated region
        $region37: #{tpu_custom_call.1} parent=27 // pred_check
          %p223 = pneg %p85
        $region38: #{tpu_custom_call.1} parent=27 // pred_check_branch
          %225 = sbr.rel (%p223) target = $region40
        $region39: #{tpu_custom_call.1} parent=27 // pred_region
          %s227 = ssub.s32 128, 128
          %228 = vsyncadd %s219, %s227
          %s229 = smul.addr %s20, 2
          %s230 = smul.addr %s229, 64
          %s231 = scalar_lea.hbm %s2, %s230
          %s233 = sshll.u32 %s222, 4
          %s234 = int_to_ptr.vmem [resolvable:$true] %s233
          %236 = dma.vmem_to_hbm [thread:$0]  %s234, 128, %s231, %s219
        $region40: #{tpu_custom_call.1} parent=27 // pred_fallthru
          _
      $region28: #{tpu_custom_call.1} parent=5 // pred_fallthru
        _
      %p237 = scmp.le.s32.totalorder 2, %s15
      // Predicated region
      $region41: #{tpu_custom_call.1} parent=5 // pred_check
        %p238 = pneg %p237
      $region42: #{tpu_custom_call.1} parent=5 // pred_check_branch
        %240 = sbr.rel (%p238) target = $region44
      $region43: #{tpu_custom_call.1} parent=5 // pred_region
        %s241 = ssub.s32 %s15, 2
        // Predicated region
        $region45: #{tpu_custom_call.1} parent=43 // pred_check
          %p242 = pneg %p91
        $region46: #{tpu_custom_call.1} parent=43 // pred_check_branch
          %244 = sbr.rel (%p242) target = $region48
        $region47: #{tpu_custom_call.1} parent=43 // pred_region
          %s245 = sand.u32 %s76, 1
          %s246 = scalar_lea.sflag [#allocation5], %s245
          %s247 = sand.u32 %s76, 1
          %s248 = smul.addr %s247, 8
          %s249 = scalar_lea.vmem [#allocation8], %s248
          %250 = dma.done %s246, 128
        $region48: #{tpu_custom_call.1} parent=43 // pred_fallthru
          _
      $region44: #{tpu_custom_call.1} parent=5 // pred_fallthru
        _
    $region6: #{tpu_custom_call.1} parent=1 // loop_footer
      %s19 = sadd.s32 1, %s15
    $region7: #{tpu_custom_call.1} parent=1 // loop_footer_branch
      %14 = sbr.rel target = $region3
    $region8: #{tpu_custom_call.1} parent=1 // loop_exit
      _
    %251 = vsyncpa [#allocation4], 1
    %s252 = scalar_lea.sflag [#allocation4], 1
    %253 = vsyncpa %s252, 1
    %254 = vsyncpa [#allocation5], 1
    %s255 = scalar_lea.sflag [#allocation5], 1
    %256 = vsyncpa %s255, 1
    %257 = vsyncpa [#allocation6], 1
    %s258 = scalar_lea.sflag [#allocation6], 1
    %259 = vsyncpa %s258, 1

</llo_original>
